<compile_context>
chip_gen: v7x
topology: tpu7x:2x2x1
jax: 0.10.0
libtpu: 0.0.40
codegen_flags: <defaults>
</compile_context>

<pallas_src>
import functools

import jax
import jax.numpy as jnp
import numpy as np
from jax import lax
from jax.experimental import pallas as pl
from jax.experimental.pallas import tpu as pltpu

_WSCALE_GAIN = float(np.sqrt(2.0))


def _round_up(v, mult):
    return ((v + mult - 1) // mult) * mult


def _dense_block_kernel(x_ref, w_ref, b_ref, o_ref, acc_ref, *,
                        wscale, bscale, neg_slope):
    # x_ref: (N_pad, TK) bf16   w_ref: (TM, TK) bf16 (PyTorch (out,in) layout)
    # b_ref: (1, TM) f32        o_ref: (N_pad, TM) f32
    # acc_ref: (N_pad, TM) f32 scratch, resident across the K grid axis.
    k = pl.program_id(1)

    @pl.when(k == 0)
    def _():
        acc_ref[...] = jnp.zeros_like(acc_ref)

    # Contract over the feature (K) axis of both operands -> no weight transpose.
    acc_ref[...] += lax.dot_general(
        x_ref[...], w_ref[...],
        dimension_numbers=(((1,), (1,)), ((), ())),
        preferred_element_type=jnp.float32,
    )

    @pl.when(k == pl.num_programs(1) - 1)
    def _():
        # Scalar wscale folded into the small output tile; bias*bscale and
        # leaky-ReLU applied exactly once, in the finalize step.
        y = acc_ref[...] * wscale + b_ref[...] * bscale
        o_ref[...] = jnp.where(y >= 0, y, neg_slope * y).astype(o_ref.dtype)


def dense_block_forward(x, weight, bias=None, *, wscale, bscale=1.0,
                        neg_slope=0.2, compute_dtype=jnp.bfloat16,
                        tm=512, tk=512):
    """DenseBlock forward: leaky_relu(x @ (weight*wscale).T + bias*bscale).

    x:      any shape with leading batch dim; flattened to (N, K)
    weight: (M, K)  (PyTorch F.linear convention)
    bias:   (M,) or None
    """
    if x.ndim != 2:
        x = x.reshape(x.shape[0], -1)
    N, K = x.shape
    M = weight.shape[0]
    if bias is None:
        bias = jnp.zeros((M,), jnp.float32)

    # --- padding / tiling glue (plain JAX) ---
    sub = 16 if jnp.dtype(compute_dtype).itemsize == 2 else 8  # sublane granule
    n_pad = _round_up(max(N, sub), sub)
    tm = min(tm, _round_up(M, 128))
    tk = min(tk, _round_up(K, 128))
    m_pad = _round_up(M, tm)
    k_pad = _round_up(K, tk)

    x_p = jnp.zeros((n_pad, k_pad), compute_dtype).at[:N, :K].set(
        x.astype(compute_dtype))
    w_p = jnp.zeros((m_pad, k_pad), compute_dtype).at[:M, :K].set(
        weight.astype(compute_dtype))
    b_p = jnp.zeros((1, m_pad), jnp.float32).at[0, :M].set(
        bias.astype(jnp.float32))

    kernel = functools.partial(
        _dense_block_kernel,
        wscale=float(wscale), bscale=float(bscale), neg_slope=float(neg_slope))

    out_p = pl.pallas_call(
        kernel,
        out_shape=jax.ShapeDtypeStruct((n_pad, m_pad), jnp.float32),
        grid=(m_pad // tm, k_pad // tk),
        in_specs=[
            pl.BlockSpec((n_pad, tk), lambda m, k: (0, k)),   # x
            pl.BlockSpec((tm, tk),    lambda m, k: (m, k)),   # weight (M, K)
            pl.BlockSpec((1, tm),     lambda m, k: (0, m)),   # bias
        ],
        out_specs=pl.BlockSpec((n_pad, tm), lambda m, k: (0, m)),
        scratch_shapes=[pltpu.VMEM((n_pad, tm), jnp.float32)],
        compiler_params=pltpu.CompilerParams(
            # M tiles are independent (megacore-parallel on v7x);
            # K is the reduction axis -> must stay sequential.
            dimension_semantics=("parallel", "arbitrary"),
        ),
    )(x_p, w_p, b_p)

    return out_p[:N, :M]


if __name__ == "__main__":
    # Small shapes consistent with the module: a 4-D NCHW activation flattened
    # into the dense layer (as the discriminator does before its final FC).
    batch, channels, spatial = 2, 4, 16
    in_channels = channels * spatial * spatial   # 1024
    out_channels = 128
    lr_mul = 1.0

    key = jax.random.PRNGKey(0)
    kx, kw = jax.random.split(key)

    x = jax.random.normal(kx, (batch, channels, spatial, spatial), jnp.float32)

    # Parameter init matching __init__ (use_wscale=True, add_bias=True):
    #   weight ~ randn(out, in) / lr_mul ;  wscale = gain / sqrt(in) * lr_mul
    #   bias   = zeros(out)              ;  bscale = lr_mul
    weight = jax.random.normal(kw, (out_channels, in_channels), jnp.float32) / lr_mul
    bias = jnp.zeros((out_channels,), jnp.float32)
    wscale = _WSCALE_GAIN / np.sqrt(in_channels) * lr_mul
    bscale = lr_mul

    out = dense_block_forward(x, weight, bias, wscale=wscale, bscale=bscale)
    out = jax.block_until_ready(out)
    assert out.shape == (batch, out_channels)

    x2d = x.reshape(batch, -1)

    # Check 1: exact kernel math (same bf16-cast inputs, f32 accumulation).
    xb = x2d.astype(jnp.bfloat16).astype(jnp.float32)
    wb = weight.astype(jnp.bfloat16).astype(jnp.float32)
    ref_b = jnp.dot(xb, wb.T, precision=lax.Precision.HIGHEST) * wscale + bias * bscale
    ref_b = jnp.where(ref_b >= 0, ref_b, 0.2 * ref_b)
    np.testing.assert_allclose(np.asarray(out), np.asarray(ref_b),
                               rtol=1e-4, atol=1e-4)

    # Check 2: full-f32 PyTorch semantics (loose tol: bf16 weight/x streaming).
    ref = x2d @ (weight * wscale).T + bias * bscale
    ref = jnp.where(ref >= 0, ref, 0.2 * ref)
    np.testing.assert_allclose(np.asarray(out), np.asarray(ref),
                               rtol=5e-2, atol=5e-2)

    print("KERNEL_OK")
</pallas_src>

<mosaic_0001>
module attributes {stable_mosaic.version = 11 : i64} {
  func.func @_dense_block_kernel(%arg0: i32, %arg1: i32, %arg2: memref<16x512xbf16, #tpu.memory_space<vmem>>, %arg3: memref<128x512xbf16, #tpu.memory_space<vmem>>, %arg4: memref<1x128xf32, #tpu.memory_space<vmem>>, %arg5: memref<16x128xf32, #tpu.memory_space<vmem>>, %arg6: memref<16x128xf32, #tpu.memory_space<vmem>>) attributes {dimension_semantics = [#tpu.dimension_semantics<parallel>, #tpu.dimension_semantics<arbitrary>], iteration_bounds = array<i64: 1, 2>, scalar_prefetch = 0 : i64, scratch_operands = 1 : i64, tpu.core_type = #tpu.core_type<tc>, window_params = [{transform_indices = @transform_0, window_bounds = array<i64: 16, 512>}, {transform_indices = @transform_1, window_bounds = array<i64: 128, 512>}, {transform_indices = @transform_2, window_bounds = array<i64: 1, 128>}, {transform_indices = @transform_3, window_bounds = array<i64: 16, 128>}]} {
    %c0_i32 = arith.constant 0 : i32
    %0 = arith.cmpi eq, %arg1, %c0_i32 : i32
    %1 = arith.extui %0 : i1 to i32
    %c0_i32_0 = arith.constant 0 : i32
    %2 = arith.cmpi ne, %1, %c0_i32_0 : i32
    scf.if %2 {
      %cst_9 = arith.constant 0.000000e+00 : f32
      %12 = vector.broadcast %cst_9 : f32 to vector<16x128xf32>
      %c0_10 = arith.constant 0 : index
      %c0_11 = arith.constant 0 : index
      %13 = vector.load %arg6[%c0_10, %c0_11] : memref<16x128xf32, #tpu.memory_space<vmem>>, vector<16x128xf32>
      tpu.vector_store %arg6[%c0_10, %c0_11], %12 {strides = array<i32>} : memref<16x128xf32, #tpu.memory_space<vmem>>, vector<16x128xf32>,
    } else {
    }
    %c0 = arith.constant 0 : index
    %c0_1 = arith.constant 0 : index
    %3 = vector.load %arg6[%c0, %c0_1] : memref<16x128xf32, #tpu.memory_space<vmem>>, vector<16x128xf32>
    %c0_2 = arith.constant 0 : index
    %c0_3 = arith.constant 0 : index
    %4 = vector.load %arg2[%c0_2, %c0_3] : memref<16x512xbf16, #tpu.memory_space<vmem>>, vector<16x512xbf16>
    %c0_4 = arith.constant 0 : index
    %c0_5 = arith.constant 0 : index
    %5 = vector.load %arg3[%c0_4, %c0_5] : memref<128x512xbf16, #tpu.memory_space<vmem>>, vector<128x512xbf16>
    %cst = arith.constant dense<0.000000e+00> : vector<16x128xf32>
    %6 = tpu.matmul %4, %5, %cst {dimension_numbers = #tpu.dot_dimension_numbers<[1], [1], [0], [0], [0, 0, 1, 0], [], []>} : vector<16x512xbf16>, vector<128x512xbf16>, vector<16x128xf32> -> vector<16x128xf32>
    %7 = arith.addf %3, %6 : vector<16x128xf32>
    %c0_6 = arith.constant 0 : index
    %c0_7 = arith.constant 0 : index
    %8 = vector.load %arg6[%c0_6, %c0_7] : memref<16x128xf32, #tpu.memory_space<vmem>>, vector<16x128xf32>
    tpu.vector_store %arg6[%c0_6, %c0_7], %7 {strides = array<i32>} : memref<16x128xf32, #tpu.memory_space<vmem>>, vector<16x128xf32>,
    %c1_i32 = arith.constant 1 : i32
    %9 = arith.cmpi eq, %arg1, %c1_i32 : i32
    %10 = arith.extui %9 : i1 to i32
    %c0_i32_8 = arith.constant 0 : i32
    %11 = arith.cmpi ne, %10, %c0_i32_8 : i32
    scf.if %11 {
      %c0_9 = arith.constant 0 : index
      %c0_10 = arith.constant 0 : index
      %12 = vector.load %arg6[%c0_9, %c0_10] : memref<16x128xf32, #tpu.memory_space<vmem>>, vector<16x128xf32>
      %cst_11 = arith.constant 0.0441941731 : f32
      %13 = vector.broadcast %cst_11 : f32 to vector<16x128xf32>
      %14 = arith.mulf %12, %13 : vector<16x128xf32>
      %c0_12 = arith.constant 0 : index
      %c0_13 = arith.constant 0 : index
      %15 = vector.load %arg4[%c0_12, %c0_13] : memref<1x128xf32, #tpu.memory_space<vmem>>, vector<1x128xf32>
      %cst_14 = arith.constant 1.000000e+00 : f32
      %16 = vector.broadcast %cst_14 : f32 to vector<1x128xf32>
      %17 = arith.mulf %15, %16 : vector<1x128xf32>
      %18 = vector.broadcast %17 : vector<1x128xf32> to vector<16x128xf32>
      %19 = arith.addf %14, %18 : vector<16x128xf32>
      %cst_15 = arith.constant 0.000000e+00 : f32
      %20 = vector.broadcast %cst_15 : f32 to vector<16x128xf32>
      %21 = arith.cmpf oge, %19, %20 : vector<16x128xf32>
      %cst_16 = arith.constant 2.000000e-01 : f32
      %22 = vector.broadcast %cst_16 : f32 to vector<16x128xf32>
      %23 = arith.mulf %22, %19 : vector<16x128xf32>
      %24 = arith.select %21, %19, %23 : vector<16x128xi1>, vector<16x128xf32>
      %c0_17 = arith.constant 0 : index
      %c0_18 = arith.constant 0 : index
      %25 = vector.load %arg5[%c0_17, %c0_18] : memref<16x128xf32, #tpu.memory_space<vmem>>, vector<16x128xf32>
      tpu.vector_store %arg5[%c0_17, %c0_18], %24 {strides = array<i32>} : memref<16x128xf32, #tpu.memory_space<vmem>>, vector<16x128xf32>,
    } else {
    }
    return
  }
  func.func @transform_0(%arg0: i32, %arg1: i32) -> (i32, i32) {
    %c0_i32 = arith.constant 0 : i32
    %c0_i32_0 = arith.constant 0 : i32
    return %c0_i32, %arg1 : i32, i32
  }
  func.func @transform_1(%arg0: i32, %arg1: i32) -> (i32, i32) {
    %c0_i32 = arith.constant 0 : i32
    return %arg0, %arg1 : i32, i32
  }
  func.func @transform_2(%arg0: i32, %arg1: i32) -> (i32, i32) {
    %c0_i32 = arith.constant 0 : i32
    %c0_i32_0 = arith.constant 0 : i32
    return %c0_i32, %arg0 : i32, i32
  }
  func.func @transform_3(%arg0: i32, %arg1: i32) -> (i32, i32) {
    %c0_i32 = arith.constant 0 : i32
    %c0_i32_0 = arith.constant 0 : i32
    return %c0_i32, %arg0 : i32, i32
  }
}

</mosaic_0001>

<llo_original>
// kernel: tpu_custom_call.1
$region0: #{tpu_custom_call.1}
  #allocation0 [shape = 'u32[]', space=smem, size = 0x4, offset = 0x4, fixed_abs, tag = 'smem constant byte address 0x4 - core index']
  #allocation1 [shape = 'u32[144,128]{1,0:T(1,128)}', space=vmem, size = 0x12000, scoped, tag = 'internal scratch']
  #allocation2 [shape = 'f32[16,128]{1,0:T(8,128)}', space=vmem, size = 0x2000, scoped, tag = 'scratch operand']
  %s0 = inlined_call_operand.hbm [shape: bf16[16,1024], index: 0, kind: input, shape index: {}]
  %s1 = inlined_call_operand.hbm [shape: bf16[128,1024], index: 1, kind: input, shape index: {}]
  %s2 = inlined_call_operand.vmem [shape: f32[1,128], index: 2, kind: input, shape index: {}]
  %s3 = inlined_call_operand.hbm [shape: f32[16,128], index: 3, kind: output, shape index: {}]
  %s4 = sld [smem:[#allocation0]]
  $region61: #{tpu_custom_call.1} parent=0
    _
  %s6 = ssub.s32 1, %s4
  %s7 = scalar_select 0, %s6, %s4
  $region1: #{tpu_custom_call.1} parent=0
    #allocation3 [shape = 'u8[32768]{0}', space=vmem, size = 0x8000, scoped, tag = 'input window, operand 0']
    #allocation4 [shape = 's32[2]{0}', space=sflag, size = 0x8, scoped, tag = 'scoped memory for tpu_custom_call.1']
    #allocation5 [shape = 's32[2]{0}', space=sflag, size = 0x8, scoped, tag = 'scoped memory for tpu_custom_call.1']
    #allocation6 [shape = 'u8[262144]{0}', space=vmem, size = 0x40000, scoped, tag = 'input window, operand 1']
    #allocation7 [shape = 's32[2]{0}', space=sflag, size = 0x8, scoped, tag = 'scoped memory for tpu_custom_call.1']
    #allocation8 [shape = 'u8[8192]{0}', space=vmem, size = 0x2000, scoped, tag = 'output window, operand 0, single buffered']
    %8 = vsyncpa [#allocation4], 0
    %s9 = scalar_lea.sflag [#allocation4], 1
    %10 = vsyncpa %s9, 0
    %11 = vsyncpa [#allocation7], 0
    %s12 = scalar_lea.sflag [#allocation7], 1
    %13 = vsyncpa %s12, 0
    %14 = vsyncpa [#allocation5], 0
    loop: start=0, step=1, limit=4
    $region2: #{tpu_custom_call.1} parent=1 // loop_pre_header
      _
    $region3: #{tpu_custom_call.1} parent=1 // loop_header
      %s16 = sphi 0, %s20
      %p17 = scmp.ge.s32.totalorder %s16, 4
      %s23 = sphi 0, %s35
      %s24 = sphi 0, %s31
      %s25 = sphi 0, %s23
      %s26 = sphi 0, %s24
      %s27 = sphi 0, %s25
      %s28 = sphi 0, %s26
      %s38 = sphi 0, %s40
      %s41 = sphi 0, %s38
      %s42 = sphi 0, %s41
      %s58 = sphi 0, %s42
      %s66 = sphi 0, %s68
      %s69 = sphi 0, %s66
      %s70 = sphi 0, %s69
      %s86 = sphi 0, %s70
      %s92 = sphi 0, %s94
      %s95 = sphi 0, %s92
      %s96 = sphi 0, %s95
      %s112 = sphi 0, %s96
      %s118 = sphi 0, %s120
      %s121 = sphi 0, %s118
      %s122 = sphi 0, %s121
      %s138 = sphi 0, %s122
    $region4: #{tpu_custom_call.1} parent=1 // loop_header_branch
      %19 = sbr.rel (%p17) target = $region8
    $region5: #{tpu_custom_call.1} parent=1 // loop_body
      %s21 = ssub.s32 %s16, 1
      %s22 = ssub.s32 %s16, 2
      %s29 = sadd.s32 1, %s24
      %p30 = scmp.ge.s32.totalorder %s29, 2
      %s31 = scalar_select %p30, 0, %s29
      %s32 = sadd.s32 1, %s23
      %s33 = scalar_select %p30, %s32, %s23
      %p34 = scmp.ge.s32.totalorder %s33, 1
      %s35 = scalar_select %p34, 0, %s33
      %s36 = ssub.s32 %s24, %s31
      %p37 = scmp.eq.s32.totalorder %s36, 0
      %s39 = sadd.s32 %s38, 1
      %s40 = scalar_select %p37, %s38, %s39
      %p43 = pneg %p37
      %p44 = scmp.eq.s32.totalorder %s16, 1
      %p45 = por %p43, %p44
      %p46 = scmp.ne.s32.totalorder %s38, %s41
      %p47 = scmp.eq.s32.totalorder %s16, 0
      %p48 = por %p46, %p47
      %p49 = scmp.ne.s32.totalorder %s38, %s41
      %p50 = scmp.eq.s32.totalorder %s21, 1
      %p51 = por %p49, %p50
      %p52 = scmp.ne.s32.totalorder %s41, %s42
      %p53 = scmp.eq.s32.totalorder %s21, 0
      %p54 = por %p52, %p53
      %p55 = scmp.ne.s32.totalorder %s41, %s42
      %p56 = scmp.eq.s32.totalorder %s22, 1
      %p57 = por %p55, %p56
      %p59 = scmp.ne.s32.totalorder %s42, %s58
      %p60 = scmp.eq.s32.totalorder %s22, 0
      %p61 = por %p59, %p60
      %s62 = ssub.s32 %s23, %s35
      %s63 = ssub.s32 %s24, %s31
      %s64 = sor.u32 %s62, %s63
      %p65 = scmp.eq.s32.totalorder %s64, 0
      %s67 = sadd.s32 %s66, 1
      %s68 = scalar_select %p65, %s66, %s67
      %p71 = pneg %p65
      %p72 = scmp.eq.s32.totalorder %s16, 1
      %p73 = por %p71, %p72
      %p74 = scmp.ne.s32.totalorder %s66, %s69
      %p75 = scmp.eq.s32.totalorder %s16, 0
      %p76 = por %p74, %p75
      %p77 = scmp.ne.s32.totalorder %s66, %s69
      %p78 = scmp.eq.s32.totalorder %s21, 1
      %p79 = por %p77, %p78
      %p80 = scmp.ne.s32.totalorder %s69, %s70
      %p81 = scmp.eq.s32.totalorder %s21, 0
      %p82 = por %p80, %p81
      %p83 = scmp.ne.s32.totalorder %s69, %s70
      %p84 = scmp.eq.s32.totalorder %s22, 1
      %p85 = por %p83, %p84
      %p87 = scmp.ne.s32.totalorder %s70, %s86
      %p88 = scmp.eq.s32.totalorder %s22, 0
      %p89 = por %p87, %p88
      %s90 = ssub.s32 %s23, %s35
      %p91 = scmp.eq.s32.totalorder %s90, 0
      %s93 = sadd.s32 %s92, 1
      %s94 = scalar_select %p91, %s92, %s93
      %p97 = pneg %p91
      %p98 = scmp.eq.s32.totalorder %s16, 1
      %p99 = por %p97, %p98
      %p100 = scmp.ne.s32.totalorder %s92, %s95
      %p101 = scmp.eq.s32.totalorder %s16, 0
      %p102 = por %p100, %p101
      %p103 = scmp.ne.s32.totalorder %s92, %s95
      %p104 = scmp.eq.s32.totalorder %s21, 1
      %p105 = por %p103, %p104
      %p106 = scmp.ne.s32.totalorder %s95, %s96
      %p107 = scmp.eq.s32.totalorder %s21, 0
      %p108 = por %p106, %p107
      %p109 = scmp.ne.s32.totalorder %s95, %s96
      %p110 = scmp.eq.s32.totalorder %s22, 1
      %p111 = por %p109, %p110
      %p113 = scmp.ne.s32.totalorder %s96, %s112
      %p114 = scmp.eq.s32.totalorder %s22, 0
      %p115 = por %p113, %p114
      %s116 = ssub.s32 %s23, %s35
      %p117 = scmp.eq.s32.totalorder %s116, 0
      %s119 = sadd.s32 %s118, 1
      %s120 = scalar_select %p117, %s118, %s119
      %p123 = pneg %p117
      %p124 = scmp.eq.s32.totalorder %s16, 1
      %p125 = por %p123, %p124
      %p126 = scmp.ne.s32.totalorder %s118, %s121
      %p127 = scmp.eq.s32.totalorder %s16, 0
      %p128 = por %p126, %p127
      %p129 = scmp.ne.s32.totalorder %s118, %s121
      %p130 = scmp.eq.s32.totalorder %s21, 1
      %p131 = por %p129, %p130
      %p132 = scmp.ne.s32.totalorder %s121, %s122
      %p133 = scmp.eq.s32.totalorder %s21, 0
      %p134 = por %p132, %p133
      %p135 = scmp.ne.s32.totalorder %s121, %s122
      %p136 = scmp.eq.s32.totalorder %s22, 1
      %p137 = por %p135, %p136
      %p139 = scmp.ne.s32.totalorder %s122, %s138
      %p140 = scmp.eq.s32.totalorder %s22, 0
      %p141 = por %p139, %p140
      %p142 = scmp.le.s32.totalorder 1, %s16
      %p143 = scmp.lt.s32.totalorder %s16, 3
      %p144 = pnand %p142, %p143
      %p145 = pneg %p144
      // Predicated region
      $region9: #{tpu_custom_call.1} parent=5 // pred_check
        _
      $region10: #{tpu_custom_call.1} parent=5 // pred_check_branch
        %147 = sbr.rel (%p144) target = $region12
      $region11: #{tpu_custom_call.1} parent=5 // pred_region
        %s148 = ssub.s32 %s16, 1
        // Predicated region
        $region13: #{tpu_custom_call.1} parent=11 // pred_check
          %p149 = pneg %p108
        $region14: #{tpu_custom_call.1} parent=11 // pred_check_branch
          %151 = sbr.rel (%p149) target = $region16
        $region15: #{tpu_custom_call.1} parent=11 // pred_region
          %p152 = scmp.lt.s32.totalorder %s25, 0
          %s153 = scalar_select %p152, %s25, 0
          %s154 = scalar_lea.vmem %s2, %s153
        $region16: #{tpu_custom_call.1} parent=11 // pred_fallthru
          _
      $region12: #{tpu_custom_call.1} parent=5 // pred_fallthru
        _
      %p155 = scmp.lt.s32.totalorder %s16, 2
      // Predicated region
      $region17: #{tpu_custom_call.1} parent=5 // pred_check
        %p156 = pneg %p155
      $region18: #{tpu_custom_call.1} parent=5 // pred_check_branch
        %158 = sbr.rel (%p156) target = $region20
      $region19: #{tpu_custom_call.1} parent=5 // pred_region
        // Predicated region
        $region21: #{tpu_custom_call.1} parent=19 // pred_check
          %p159 = pneg %p48
        $region22: #{tpu_custom_call.1} parent=19 // pred_check_branch
          %161 = sbr.rel (%p159) target = $region24
        $region23: #{tpu_custom_call.1} parent=19 // pred_region
          %s162 = sand.u32 %s38, 1
          %s163 = scalar_lea.sflag [#allocation4], %s162
          %s164 = sand.u32 %s38, 1
          %s165 = smul.addr %s164, 32
          %s166 = scalar_lea.vmem [#allocation3], %s165
          %s167 = smul.u32 4, %s24
          %s169 = ssub.s32 512, 512
          %170 = vsyncadd %s163, %s169
          %s171 = smul.addr %s167, 64
          %s172 = scalar_lea.hbm %s0, %s171
          %s173 = sshll.u32 %s166, 4
          %s174 = int_to_ptr.vmem [resolvable:$true] %s173
          %179 = dma.hbm_to_vmem [thread:$0]  %s172, 512, %s174, %s163, 512, 256, 16
        $region24: #{tpu_custom_call.1} parent=19 // pred_fallthru
          _
        // Predicated region
        $region25: #{tpu_custom_call.1} parent=19 // pred_check
          %p180 = pneg %p76
        $region26: #{tpu_custom_call.1} parent=19 // pred_check_branch
          %182 = sbr.rel (%p180) target = $region28
        $region27: #{tpu_custom_call.1} parent=19 // pred_region
          %s183 = sand.u32 %s66, 1
          %s184 = scalar_lea.sflag [#allocation7], %s183
          %s185 = sand.u32 %s66, 1
          %s186 = smul.addr %s185, 256
          %s187 = scalar_lea.vmem [#allocation6], %s186
          %s188 = smul.u32 16, %s23
          %s189 = smul.u32 4, %s24
          %s191 = ssub.s32 4096, 4096
          %192 = vsyncadd %s184, %s191
          %s193 = smul.addr %s188, 8
          %s194 = sadd.s32 %s189, %s193
          %s195 = smul.addr %s194, 64
          %s196 = scalar_lea.hbm %s1, %s195
          %s197 = sshll.u32 %s187, 4
          %s198 = int_to_ptr.vmem [resolvable:$true] %s197
          %203 = dma.hbm_to_vmem [thread:$0]  %s196, 4096, %s198, %s184, 512, 256, 16
        $region28: #{tpu_custom_call.1} parent=19 // pred_fallthru
          _
      $region20: #{tpu_custom_call.1} parent=5 // pred_fallthru
        _
      %p204 = scmp.le.s32.totalorder 1, %s16
      %p205 = scmp.lt.s32.totalorder %s16, 3
      %p206 = pnand %p204, %p205
      %p207 = pneg %p206
      // Predicated region
      $region29: #{tpu_custom_call.1} parent=5 // pred_check
        _
      $region30: #{tpu_custom_call.1} parent=5 // pred_check_branch
        %209 = sbr.rel (%p206) target = $region32
      $region31: #{tpu_custom_call.1} parent=5 // pred_region
        %s210 = ssub.s32 %s16, 1
        %s211 = sand.u32 %s41, 1
        %s212 = scalar_lea.sflag [#allocation4], %s211
        %s213 = sand.u32 %s41, 1
        %s214 = smul.addr %s213, 32
        %s215 = scalar_lea.vmem [#allocation3], %s214
        // Predicated region
        $region33: #{tpu_custom_call.1} parent=31 // pred_check
          %p216 = pneg %p54
        $region34: #{tpu_custom_call.1} parent=31 // pred_check_branch
          %218 = sbr.rel (%p216) target = $region36
        $region35: #{tpu_custom_call.1} parent=31 // pred_region
          %219 = dma.done %s212, 512
        $region36: #{tpu_custom_call.1} parent=31 // pred_fallthru
          _
        %s220 = sand.u32 %s69, 1
        %s221 = scalar_lea.sflag [#allocation7], %s220
        %s222 = sand.u32 %s69, 1
        %s223 = smul.addr %s222, 256
        %s224 = scalar_lea.vmem [#allocation6], %s223
        // Predicated region
        $region37: #{tpu_custom_call.1} parent=31 // pred_check
          %p225 = pneg %p82
        $region38: #{tpu_custom_call.1} parent=31 // pred_check_branch
          %227 = sbr.rel (%p225) target = $region40
        $region39: #{tpu_custom_call.1} parent=31 // pred_region
          %228 = dma.done %s221, 4096
        $region40: #{tpu_custom_call.1} parent=31 // pred_fallthru
          _
        %s229 = sand.u32 %s41, 1
        %s230 = scalar_lea.sflag [#allocation4], %s229
        %s231 = sand.u32 %s41, 1
        %s232 = smul.addr %s231, 32
        %s233 = scalar_lea.vmem [#allocation3], %s232
        %p234 = pneg %p54
        %p235 = pneg %p51
        %s236 = sand.u32 %s69, 1
        %s237 = scalar_lea.sflag [#allocation7], %s236
        %s238 = sand.u32 %s69, 1
        %s239 = smul.addr %s238, 256
        %s240 = scalar_lea.vmem [#allocation6], %s239
        %p241 = pneg %p82
        %p242 = pneg %p79
        %p243 = scmp.lt.s32.totalorder %s25, 0
        %s244 = scalar_select %p243, %s25, 0
        %s245 = scalar_lea.vmem %s2, %s244
        %p246 = pneg %p108
        %p247 = pneg %p105
        %p248 = pneg %p134
        %p249 = pneg %p131
        %s250 = smul.u32 4, %s26
        %s251 = smul.u32 16, %s25
        %s252 = smul.u32 4, %s26
        %p253 = scmp.lt.s32.totalorder %s25, 0
        %s254 = scalar_select %p253, %s25, 0
        %s255 = scalar_lea.vmem %s2, %s254
        %p257 = scmp.eq.s32.totalorder %s26, 0
        // Predicated region
        $region41: #{tpu_custom_call.1} parent=31 // pred_check
          %p258 = pneg %p257
        $region42: #{tpu_custom_call.1} parent=31 // pred_check_branch
          %260 = sbr.rel (%p258) target = $region44
        $region43: #{tpu_custom_call.1} parent=31 // pred_region
          %261 = vst [vmem:[#allocation2] sm:$0xff] 0.0
          %262 = vst [vmem:[#allocation2 + $0x8] sm:$0xff] 0.0
        $region44: #{tpu_custom_call.1} parent=31 // pred_fallthru
          _
        %v263 = vld [vmem:[#allocation2] sm:$0xff]
        %v264 = vld [vmem:[#allocation2 + $0x8] sm:$0xff]
        %v265 = vld [vmem:[%s215] sm:$0xff]
        %v266 = vld [vmem:[%s215 + $0x8] sm:$0xff]
        %v267 = vld [vmem:[%s215 + $0x10] sm:$0xff]
        %v268 = vld [vmem:[%s215 + $0x18] sm:$0xff]
        %v269 = vld [vmem:[%s224] sm:$0xff]
        %v270 = vld [vmem:[%s224 + $0x8] sm:$0xff]
        %v271 = vld [vmem:[%s224 + $0x10] sm:$0xff]
        %v272 = vld [vmem:[%s224 + $0x18] sm:$0xff]
        %v273 = vld [vmem:[%s224 + $0x20] sm:$0xff]
        %v274 = vld [vmem:[%s224 + $0x28] sm:$0xff]
        %v275 = vld [vmem:[%s224 + $0x30] sm:$0xff]
        %v276 = vld [vmem:[%s224 + $0x38] sm:$0xff]
        %v277 = vld [vmem:[%s224 + $0x40] sm:$0xff]
        %v278 = vld [vmem:[%s224 + $0x48] sm:$0xff]
        %v279 = vld [vmem:[%s224 + $0x50] sm:$0xff]
        %v280 = vld [vmem:[%s224 + $0x58] sm:$0xff]
        %v281 = vld [vmem:[%s224 + $0x60] sm:$0xff]
        %v282 = vld [vmem:[%s224 + $0x68] sm:$0xff]
        %v283 = vld [vmem:[%s224 + $0x70] sm:$0xff]
        %v284 = vld [vmem:[%s224 + $0x78] sm:$0xff]
        %v285 = vld [vmem:[%s224 + $0x80] sm:$0xff]
        %v286 = vld [vmem:[%s224 + $0x88] sm:$0xff]
        %v287 = vld [vmem:[%s224 + $0x90] sm:$0xff]
        %v288 = vld [vmem:[%s224 + $0x98] sm:$0xff]
        %v289 = vld [vmem:[%s224 + $0xa0] sm:$0xff]
        %v290 = vld [vmem:[%s224 + $0xa8] sm:$0xff]
        %v291 = vld [vmem:[%s224 + $0xb0] sm:$0xff]
        %v292 = vld [vmem:[%s224 + $0xb8] sm:$0xff]
        %v293 = vld [vmem:[%s224 + $0xc0] sm:$0xff]
        %v294 = vld [vmem:[%s224 + $0xc8] sm:$0xff]
        %v295 = vld [vmem:[%s224 + $0xd0] sm:$0xff]
        %v296 = vld [vmem:[%s224 + $0xd8] sm:$0xff]
        %v297 = vld [vmem:[%s224 + $0xe0] sm:$0xff]
        %v298 = vld [vmem:[%s224 + $0xe8] sm:$0xff]
        %v299 = vld [vmem:[%s224 + $0xf0] sm:$0xff]
        %v300 = vld [vmem:[%s224 + $0xf8] sm:$0xff]
        %v305 = vunpack.c.l.b16 %v265
        %v306 = vunpack.c.h.b16 %v265
        %v307 = vunpack.c.l.b16 %v266
        %v308 = vunpack.c.h.b16 %v266
        %v309 = vunpack.c.l.b16 %v267
        %v310 = vunpack.c.h.b16 %v267
        %v311 = vunpack.c.l.b16 %v268
        %v312 = vunpack.c.h.b16 %v268
        %v313 = vpack.c.b16 %v309, %v305
        %v314 = vpack.c.b16 %v310, %v306
        %v315 = vpack.c.b16 %v311, %v307
        %v316 = vpack.c.b16 %v312, %v308
        %v353 = vunpack.c.l.b16 %v269
        %v354 = vunpack.c.h.b16 %v269
        %v355 = vunpack.c.l.b16 %v270
        %v356 = vunpack.c.h.b16 %v270
        %v357 = vunpack.c.l.b16 %v271
        %v358 = vunpack.c.h.b16 %v271
        %v359 = vunpack.c.l.b16 %v272
        %v360 = vunpack.c.h.b16 %v272
        %v361 = vunpack.c.l.b16 %v273
        %v362 = vunpack.c.h.b16 %v273
        %v363 = vunpack.c.l.b16 %v274
        %v364 = vunpack.c.h.b16 %v274
        %v365 = vunpack.c.l.b16 %v275
        %v366 = vunpack.c.h.b16 %v275
        %v367 = vunpack.c.l.b16 %v276
        %v368 = vunpack.c.h.b16 %v276
        %v369 = vunpack.c.l.b16 %v277
        %v370 = vunpack.c.h.b16 %v277
        %v371 = vunpack.c.l.b16 %v278
        %v372 = vunpack.c.h.b16 %v278
        %v373 = vunpack.c.l.b16 %v279
        %v374 = vunpack.c.h.b16 %v279
        %v375 = vunpack.c.l.b16 %v280
        %v376 = vunpack.c.h.b16 %v280
        %v377 = vunpack.c.l.b16 %v281
        %v378 = vunpack.c.h.b16 %v281
        %v379 = vunpack.c.l.b16 %v282
        %v380 = vunpack.c.h.b16 %v282
        %v381 = vunpack.c.l.b16 %v283
        %v382 = vunpack.c.h.b16 %v283
        %v383 = vunpack.c.l.b16 %v284
        %v384 = vunpack.c.h.b16 %v284
        %v385 = vunpack.c.l.b16 %v285
        %v386 = vunpack.c.h.b16 %v285
        %v387 = vunpack.c.l.b16 %v286
        %v388 = vunpack.c.h.b16 %v286
        %v389 = vunpack.c.l.b16 %v287
        %v390 = vunpack.c.h.b16 %v287
        %v391 = vunpack.c.l.b16 %v288
        %v392 = vunpack.c.h.b16 %v288
        %v393 = vunpack.c.l.b16 %v289
        %v394 = vunpack.c.h.b16 %v289
        %v395 = vunpack.c.l.b16 %v290
        %v396 = vunpack.c.h.b16 %v290
        %v397 = vunpack.c.l.b16 %v291
        %v398 = vunpack.c.h.b16 %v291
        %v399 = vunpack.c.l.b16 %v292
        %v400 = vunpack.c.h.b16 %v292
        %v401 = vunpack.c.l.b16 %v293
        %v402 = vunpack.c.h.b16 %v293
        %v403 = vunpack.c.l.b16 %v294
        %v404 = vunpack.c.h.b16 %v294
        %v405 = vunpack.c.l.b16 %v295
        %v406 = vunpack.c.h.b16 %v295
        %v407 = vunpack.c.l.b16 %v296
        %v408 = vunpack.c.h.b16 %v296
        %v409 = vunpack.c.l.b16 %v297
        %v410 = vunpack.c.h.b16 %v297
        %v411 = vunpack.c.l.b16 %v298
        %v412 = vunpack.c.h.b16 %v298
        %v413 = vunpack.c.l.b16 %v299
        %v414 = vunpack.c.h.b16 %v299
        %v415 = vunpack.c.l.b16 %v300
        %v416 = vunpack.c.h.b16 %v300
        %v417 = vpack.c.b16 %v357, %v353
        %v418 = vpack.c.b16 %v358, %v354
        %v419 = vpack.c.b16 %v359, %v355
        %v420 = vpack.c.b16 %v360, %v356
        %v421 = vpack.c.b16 %v365, %v361
        %v422 = vpack.c.b16 %v366, %v362
        %v423 = vpack.c.b16 %v367, %v363
        %v424 = vpack.c.b16 %v368, %v364
        %v425 = vpack.c.b16 %v373, %v369
        %v426 = vpack.c.b16 %v374, %v370
        %v427 = vpack.c.b16 %v375, %v371
        %v428 = vpack.c.b16 %v376, %v372
        %v429 = vpack.c.b16 %v381, %v377
        %v430 = vpack.c.b16 %v382, %v378
        %v431 = vpack.c.b16 %v383, %v379
        %v432 = vpack.c.b16 %v384, %v380
        %v433 = vpack.c.b16 %v389, %v385
        %v434 = vpack.c.b16 %v390, %v386
        %v435 = vpack.c.b16 %v391, %v387
        %v436 = vpack.c.b16 %v392, %v388
        %v437 = vpack.c.b16 %v397, %v393
        %v438 = vpack.c.b16 %v398, %v394
        %v439 = vpack.c.b16 %v399, %v395
        %v440 = vpack.c.b16 %v400, %v396
        %v441 = vpack.c.b16 %v405, %v401
        %v442 = vpack.c.b16 %v406, %v402
        %v443 = vpack.c.b16 %v407, %v403
        %v444 = vpack.c.b16 %v408, %v404
        %v445 = vpack.c.b16 %v413, %v409
        %v446 = vpack.c.b16 %v414, %v410
        %v447 = vpack.c.b16 %v415, %v411
        %v448 = vpack.c.b16 %v416, %v412
        %481 = vmatprep.subr.bf16.mxu0 %v418
        %482 = vmatpush1.bf16.xpose.msra.mxu0 %v417
        %483 = vmatprep.subr.bf16.mxu0 %v422
        %484 = vmatpush1.bf16.xpose.msra.mxu0 %v421
        %485 = vmatprep.subr.bf16.mxu0 %v426
        %486 = vmatpush1.bf16.xpose.msra.mxu0 %v425
        %487 = vmatprep.subr.bf16.mxu0 %v430
        %488 = vmatpush1.bf16.xpose.msra.mxu0 %v429
        %489 = vmatprep.subr.bf16.mxu0 %v434
        %490 = vmatpush1.bf16.xpose.msra.mxu0 %v433
        %491 = vmatprep.subr.bf16.mxu0 %v438
        %492 = vmatpush1.bf16.xpose.msra.mxu0 %v437
        %493 = vmatprep.subr.bf16.mxu0 %v442
        %494 = vmatpush1.bf16.xpose.msra.mxu0 %v441
        %495 = vmatprep.subr.bf16.mxu0 %v446
        %496 = vmatpush1.bf16.xpose.msra.mxu0 %v445
        %497 = vmatprep.subr.bf16.mxu0 0
        %498 = vmatpush1.bf16.xpose.msra.mxu0 0
        %499 = vmatprep.subr.bf16.mxu0 0
        %500 = vmatpush1.bf16.xpose.msra.mxu0 0
        %501 = vmatprep.subr.bf16.mxu0 0
        %502 = vmatpush1.bf16.xpose.msra.mxu0 0
        %503 = vmatprep.subr.bf16.mxu0 0
        %504 = vmatpush1.bf16.xpose.msra.mxu0 0
        %505 = vmatprep.subr.bf16.mxu0 0
        %506 = vmatpush1.bf16.xpose.msra.mxu0 0
        %507 = vmatprep.subr.bf16.mxu0 0
        %508 = vmatpush1.bf16.xpose.msra.mxu0 0
        %509 = vmatprep.subr.bf16.mxu0 0
        %510 = vmatpush1.bf16.xpose.msra.mxu0 0
        %511 = vmatprep.subr.bf16.mxu0 0
        %512 = vmatpush1.bf16.xpose.msra.mxu0 0
        %513 = vmatprep.mubr.bf16.mxu0 %v314
        %514 = vmatmul.mubr.bf16.gmra.mrb[0].mxu0 %v313
        %v515 = vpop.f32.mrb[0].mxu0
        %v516 = vadd.f32 0.0, %v515
        %v517 = vpop.f32.mrb[0].mxu0
        %v518 = vpop.f32.mrb[0].mxu0
        %v519 = vadd.f32 0.0, %v518
        %v520 = vpop.f32.mrb[0].mxu0
        %521 = vdwg.mxu0
        %522 = vmatprep.subr.bf16.mxu0 %v420
        %523 = vmatpush1.bf16.xpose.msra.mxu0 %v419
        %524 = vmatprep.subr.bf16.mxu0 %v424
        %525 = vmatpush1.bf16.xpose.msra.mxu0 %v423
        %526 = vmatprep.subr.bf16.mxu0 %v428
        %527 = vmatpush1.bf16.xpose.msra.mxu0 %v427
        %528 = vmatprep.subr.bf16.mxu0 %v432
        %529 = vmatpush1.bf16.xpose.msra.mxu0 %v431
        %530 = vmatprep.subr.bf16.mxu0 %v436
        %531 = vmatpush1.bf16.xpose.msra.mxu0 %v435
        %532 = vmatprep.subr.bf16.mxu0 %v440
        %533 = vmatpush1.bf16.xpose.msra.mxu0 %v439
        %534 = vmatprep.subr.bf16.mxu0 %v444
        %535 = vmatpush1.bf16.xpose.msra.mxu0 %v443
        %536 = vmatprep.subr.bf16.mxu0 %v448
        %537 = vmatpush1.bf16.xpose.msra.mxu0 %v447
        %538 = vmatprep.subr.bf16.mxu0 0
        %539 = vmatpush1.bf16.xpose.msra.mxu0 0
        %540 = vmatprep.subr.bf16.mxu0 0
        %541 = vmatpush1.bf16.xpose.msra.mxu0 0
        %542 = vmatprep.subr.bf16.mxu0 0
        %543 = vmatpush1.bf16.xpose.msra.mxu0 0
        %544 = vmatprep.subr.bf16.mxu0 0
        %545 = vmatpush1.bf16.xpose.msra.mxu0 0
        %546 = vmatprep.subr.bf16.mxu0 0
        %547 = vmatpush1.bf16.xpose.msra.mxu0 0
        %548 = vmatprep.subr.bf16.mxu0 0
        %549 = vmatpush1.bf16.xpose.msra.mxu0 0
        %550 = vmatprep.subr.bf16.mxu0 0
        %551 = vmatpush1.bf16.xpose.msra.mxu0 0
        %552 = vmatprep.subr.bf16.mxu0 0
        %553 = vmatpush1.bf16.xpose.msra.mxu0 0
        %554 = vmatprep.mubr.bf16.mxu0 %v316
        %555 = vmatmul.mubr.bf16.gmra.mrb[0].mxu0 %v315
        %v556 = vpop.f32.mrb[0].mxu0
        %v557 = vadd.f32 %v516, %v556
        %v558 = vpop.f32.mrb[0].mxu0
        %v559 = vpop.f32.mrb[0].mxu0
        %v560 = vadd.f32 %v519, %v559
        %v561 = vpop.f32.mrb[0].mxu0
        %562 = vdwg.mxu0
        %v563 = vadd.f32 %v263, %v557
        %v564 = vadd.f32 %v264, %v560
        %565 = vst [vmem:[#allocation2] sm:$0xff] %v563
        %566 = vst [vmem:[#allocation2 + $0x8] sm:$0xff] %v564
        %p567 = scmp.eq.s32.totalorder %s26, 1
        // Predicated region
        $region45: #{tpu_custom_call.1} parent=31 // pred_check
          %p568 = pneg %p567
        $region46: #{tpu_custom_call.1} parent=31 // pred_check_branch
          %570 = sbr.rel (%p568) target = $region48
        $region47: #{tpu_custom_call.1} parent=31 // pred_region
          %v571 = vld [vmem:[#allocation2] sm:$0xff]
          %v572 = vld [vmem:[#allocation2 + $0x8] sm:$0xff]
          %v573 = vmul.f32 %v571, 0.044194173
          %v574 = vmul.f32 %v572, 0.044194173
          %v575 = vld [vmem:[%s255] sm:$0x1]
          %v577 = vlaneseq
          %v578 = vshrl.u32 %v577, 7
          %v579 = vsub.s32 0, %v578
          %v580 = vrot.slane %v575, %v579
          %v582 = vadd.f32 %v573, %v580
          %v583 = vadd.f32 %v574, %v580
          %vm584 = vcmp.ge.f32.partialorder %v582, 0.0
          %vm585 = vcmp.ge.f32.partialorder %v583, 0.0
          %v586 = vmul.f32 %v582, 0.2
          %v587 = vmul.f32 %v583, 0.2
          %v588 = vsel %vm584, %v582, %v586
          %v589 = vsel %vm585, %v583, %v587
          %590 = vst [vmem:[#allocation8] sm:$0xff] %v588
          %591 = vst [vmem:[#allocation8 + $0x8] sm:$0xff] %v589
        $region48: #{tpu_custom_call.1} parent=31 // pred_fallthru
          _
        // Predicated region
        $region49: #{tpu_custom_call.1} parent=31 // pred_check
          %p592 = pneg %p131
        $region50: #{tpu_custom_call.1} parent=31 // pred_check_branch
          %594 = sbr.rel (%p592) target = $region52
        $region51: #{tpu_custom_call.1} parent=31 // pred_region
          %s596 = ssub.s32 256, 256
          %597 = vsyncadd [#allocation5], %s596
          %s598 = smul.addr %s25, 128
          %s599 = scalar_lea.hbm %s3, %s598
          %s600 = sshll.u32 [#allocation8], 4
          %s601 = int_to_ptr.vmem [resolvable:$true] %s600
          %606 = dma.vmem_to_hbm [thread:$0]  %s601, 256, %s599, [#allocation5], 128, 128, 8
        $region52: #{tpu_custom_call.1} parent=31 // pred_fallthru
          _
        // Predicated region
        $region53: #{tpu_custom_call.1} parent=31 // pred_check
          %p607 = pneg %p131
        $region54: #{tpu_custom_call.1} parent=31 // pred_check_branch
          %609 = sbr.rel (%p607) target = $region56
        $region55: #{tpu_custom_call.1} parent=31 // pred_region
          %610 = dma.done [#allocation5], 256
        $region56: #{tpu_custom_call.1} parent=31 // pred_fallthru
          _
      $region32: #{tpu_custom_call.1} parent=5 // pred_fallthru
        _
      %p611 = scmp.le.s32.totalorder 2, %s16
      // Predicated region
      $region57: #{tpu_custom_call.1} parent=5 // pred_check
        %p612 = pneg %p611
      $region58: #{tpu_custom_call.1} parent=5 // pred_check_branch
        %614 = sbr.rel (%p612) target = $region60
      $region59: #{tpu_custom_call.1} parent=5 // pred_region
        %s615 = ssub.s32 %s16, 2
      $region60: #{tpu_custom_call.1} parent=5 // pred_fallthru
        _
    $region6: #{tpu_custom_call.1} parent=1 // loop_footer
      %s20 = sadd.s32 1, %s16
    $region7: #{tpu_custom_call.1} parent=1 // loop_footer_branch
      %15 = sbr.rel target = $region3
    $region8: #{tpu_custom_call.1} parent=1 // loop_exit
      _
    %616 = vsyncpa [#allocation4], 1
    %s617 = scalar_lea.sflag [#allocation4], 1
    %618 = vsyncpa %s617, 1
    %619 = vsyncpa [#allocation7], 1
    %s620 = scalar_lea.sflag [#allocation7], 1
    %621 = vsyncpa %s620, 1
    %622 = vsyncpa [#allocation5], 1
    %s623 = scalar_lea.sflag [#allocation5], 1
    %624 = vsyncpa %s623, 1

</llo_original>
